<compile_context>
chip_gen: v5e
topology: v5e:2x2
jax: 0.10.0
libtpu: 0.0.40
codegen_flags: <defaults>
</compile_context>

<pallas_src>
import jax
import jax.numpy as jnp
from jax.experimental import pallas as pl
from jax.experimental.pallas import tpu as pltpu


_TARGET_TILE_BYTES = 2 * 1024 * 1024  # ~2 MiB output tile per grid step


def _choose_batch_tile(batch: int, row_bytes: int, sublane_align: bool) -> int:
    """Number of batch rows handled per grid step."""
    bt = min(batch, max(1, _TARGET_TILE_BYTES // max(row_bytes, 1)))
    if batch >= 2:
        # Keep at least 2 grid steps so the "parallel" batch axis can shard
        # across both TensorCores on v7x.
        bt = min(bt, (batch + 1) // 2)
    if sublane_align and bt != batch and bt % 8 != 0:
        # (8, 128) block constraint on the 2-D (B, T*D) arrays: the
        # second-to-last block dim must be a multiple of 8 or the full dim.
        bt = (bt // 8) * 8
        if bt < 8:
            bt = batch  # tiny batch: one full-batch block (constraint-safe)
    return max(1, bt)


def _gpe_flat_kernel(g_ref, blk_ref, out_ref):
    """Lane-dense path (used when D % 128 != 0 but (T*D) % 128 == 0).

    g_ref   : VMEM (Bt, D)    f32 -- gathered global rows for this batch tile
    blk_ref : VMEM (1, T*D)   f32 -- flattened block embedding (grid invariant)
    out_ref : VMEM (Bt, T*D)  out dtype
    """
    d = g_ref.shape[-1]
    reps = blk_ref.shape[-1] // d
    g = g_ref[...]
    # Replicate the D-wide global row T times along lanes -> (Bt, T*D).
    # (Lane replication is XLU/VPU work, fully hidden under the HBM write.)
    g_flat = jnp.concatenate([g] * reps, axis=-1) if reps > 1 else g
    out_ref[...] = (g_flat + blk_ref[...]).astype(out_ref.dtype)


def _gpe_3d_kernel(g_ref, blk_ref, out_ref):
    """Natural 3-D path (used when D is already lane dense, D % 128 == 0).

    g_ref   : VMEM (Bt, 1, D) f32
    blk_ref : VMEM (T, D)     f32 (grid invariant)
    out_ref : VMEM (Bt, T, D) out dtype
    """
    out_ref[...] = (blk_ref[...] + g_ref[...]).astype(out_ref.dtype)


def global_position_encoding(t, global_emb, block_emb, *, out_dtype=jnp.float32):
    """JAX/Pallas equivalent of GlobalPositionEncoding.forward.

    t          : (B, T) int
    global_emb : (1, max_timestep, D) f32  (torch Parameter layout)
    block_emb  : (1, 3*context_size, D) f32 (torch Parameter layout)
    returns    : (B, T, D) in `out_dtype` (default f32, matching PyTorch)
    """
    assert t.ndim == 2, "Expects (B, T)"
    B, T = t.shape
    assert global_emb.ndim == 3 and global_emb.shape[0] == 1
    assert block_emb.ndim == 3 and block_emb.shape[0] == 1
    _, max_timestep, D = global_emb.shape
    L = block_emb.shape[1]
    assert T <= L, "context longer than block position table"

    # Gather only the B needed rows of the global table (tiny (B, D) gather)
    # instead of holding the whole (max_timestep, D) table in VMEM.
    # Clamp so an out-of-range timestep cannot read arbitrary memory.
    last_t = jnp.clip(t[:, -1].astype(jnp.int32), 0, max_timestep - 1)
    g_rows = jnp.take(global_emb[0], last_t, axis=0)  # (B, D) f32

    itemsize = jnp.dtype(out_dtype).itemsize
    row_bytes = T * D * itemsize
    cost = pl.CostEstimate(
        flops=B * T * D,
        transcendentals=0,
        bytes_accessed=(B * D + T * D) * 4 + B * T * D * itemsize,
    )
    cparams = pltpu.CompilerParams(dimension_semantics=("parallel",))

    lane_dense_flat = (D % 128 != 0) and ((T * D) % 128 == 0)

    if lane_dense_flat:
        bt = _choose_batch_tile(B, row_bytes, sublane_align=True)
        # Tiny (T*D*4-byte) wrapper prep; the big (B, T*D) write stays dense.
        blk_flat = block_emb[0, :T, :].reshape(1, T * D)
        out_flat = pl.pallas_call(
            _gpe_flat_kernel,
            out_shape=jax.ShapeDtypeStruct((B, T * D), out_dtype),
            grid=(pl.cdiv(B, bt),),
            in_specs=[
                pl.BlockSpec((bt, D), lambda i: (i, 0)),
                # Grid-invariant input: constant index_map -> fetched once; the
                # default double-buffer costs only ~T*D*4 extra bytes of VMEM.
                pl.BlockSpec((1, T * D), lambda i: (0, 0)),
            ],
            out_specs=pl.BlockSpec((bt, T * D), lambda i: (i, 0)),
            compiler_params=cparams,
            cost_estimate=cost,
        )(g_rows, blk_flat)
        # Present the module's (B, T, D) interface.  A consumer that can take
        # the flat (B, T*D) layout directly should do so to skip the relayout.
        return out_flat.reshape(B, T, D)

    # D is a multiple of 128 (or T*D is not): natural 3-D blocking.
    bt = _choose_batch_tile(B, row_bytes, sublane_align=False)
    g3 = g_rows.reshape(B, 1, D)  # (1, D) trailing dims -> no constraint on bt
    if T == L or T % 8 == 0:
        # Slice the first T rows straight out of the (1, L, D) parameter via
        # the BlockSpec (no wrapper-side squeeze+slice copy of block_emb).
        blk_arg = block_emb
        blk_spec = pl.BlockSpec((None, T, D), lambda i: (0, 0, 0))
    else:
        blk_arg = block_emb[0, :T, :]
        blk_spec = pl.BlockSpec((T, D), lambda i: (0, 0))
    return pl.pallas_call(
        _gpe_3d_kernel,
        out_shape=jax.ShapeDtypeStruct((B, T, D), out_dtype),
        grid=(pl.cdiv(B, bt),),
        in_specs=[
            pl.BlockSpec((bt, 1, D), lambda i: (i, 0, 0)),
            blk_spec,
        ],
        out_specs=pl.BlockSpec((bt, T, D), lambda i: (i, 0, 0)),
        compiler_params=cparams,
        cost_estimate=cost,
    )(g3, blk_arg)


if __name__ == "__main__":
    key = jax.random.PRNGKey(0)
    k1, k2, k3 = jax.random.split(key, 3)

    # --- primary demo: embed_dim < 128 exercises the lane-dense flat path ---
    B, T, D = 2, 8, 32
    MAX_TIMESTEP = 16
    global_emb = jax.random.normal(k1, (1, MAX_TIMESTEP, D), dtype=jnp.float32) * 0.02
    block_emb = jax.random.normal(k2, (1, 3 * T, D), dtype=jnp.float32) * 0.02
    t = jax.random.randint(k3, (B, T), 0, MAX_TIMESTEP, dtype=jnp.int32)

    out = jax.block_until_ready(global_position_encoding(t, global_emb, block_emb))

    ref = global_emb[0][t[:, -1]][:, None, :] + block_emb[0, :T, :][None, :, :]
    assert out.shape == (B, T, D) and out.dtype == jnp.float32
    assert jnp.allclose(out, ref, atol=1e-6), "flat-path mismatch vs reference"

    # --- secondary check: embed_dim multiple of 128 exercises the 3-D path ---
    B2, T2, D2 = 4, 8, 128
    g2 = jax.random.normal(k1, (1, MAX_TIMESTEP, D2), dtype=jnp.float32) * 0.02
    b2 = jax.random.normal(k2, (1, 3 * T2, D2), dtype=jnp.float32) * 0.02
    t2 = jax.random.randint(k3, (B2, T2), 0, MAX_TIMESTEP, dtype=jnp.int32)
    out2 = jax.block_until_ready(global_position_encoding(t2, g2, b2))
    ref2 = g2[0][t2[:, -1]][:, None, :] + b2[0, :T2, :][None, :, :]
    assert out2.shape == (B2, T2, D2)
    assert jnp.allclose(out2, ref2, atol=1e-6), "3d-path mismatch vs reference"

    print("KERNEL_OK")
</pallas_src>

<mosaic_0001>
module attributes {stable_mosaic.version = 11 : i64} {
  func.func @_gpe_flat_kernel(%arg0: i32, %arg1: memref<2x32xf32, #tpu.memory_space<vmem>>, %arg2: memref<1x256xf32, #tpu.memory_space<vmem>>, %arg3: memref<2x256xf32, #tpu.memory_space<vmem>>) attributes {dimension_semantics = [#tpu.dimension_semantics<parallel>], iteration_bounds = array<i64: 1>, scalar_prefetch = 0 : i64, scratch_operands = 0 : i64, tpu.core_type = #tpu.core_type<tc>, window_params = [{transform_indices = @transform_0, window_bounds = array<i64: 2, 32>}, {pipeline_mode = #tpu.pipeline_mode<synchronous>, transform_indices = @transform_1, window_bounds = array<i64: 1, 256>}, {transform_indices = @transform_2, window_bounds = array<i64: 2, 256>}]} {
    %c0 = arith.constant 0 : index
    %c0_0 = arith.constant 0 : index
    %0 = vector.load %arg1[%c0, %c0_0] : memref<2x32xf32, #tpu.memory_space<vmem>>, vector<2x32xf32>
    %1 = tpu.concatenate %0, %0, %0, %0, %0, %0, %0, %0 in 1 : vector<2x32xf32>, vector<2x32xf32>, vector<2x32xf32>, vector<2x32xf32>, vector<2x32xf32>, vector<2x32xf32>, vector<2x32xf32>, vector<2x32xf32> -> vector<2x256xf32>
    %c0_1 = arith.constant 0 : index
    %c0_2 = arith.constant 0 : index
    %2 = vector.load %arg2[%c0_1, %c0_2] : memref<1x256xf32, #tpu.memory_space<vmem>>, vector<1x256xf32>
    %3 = vector.broadcast %2 : vector<1x256xf32> to vector<2x256xf32>
    %4 = arith.addf %1, %3 : vector<2x256xf32>
    %c0_3 = arith.constant 0 : index
    %c0_4 = arith.constant 0 : index
    %5 = vector.load %arg3[%c0_3, %c0_4] : memref<2x256xf32, #tpu.memory_space<vmem>>, vector<2x256xf32>
    tpu.vector_store %arg3[%c0_3, %c0_4], %4 {strides = array<i32>} : memref<2x256xf32, #tpu.memory_space<vmem>>, vector<2x256xf32>,
    return
  }
  func.func @transform_0(%arg0: i32) -> (i32, i32) {
    %c0_i32 = arith.constant 0 : i32
    %c0_i32_0 = arith.constant 0 : i32
    return %arg0, %c0_i32 : i32, i32
  }
  func.func @transform_1(%arg0: i32) -> (i32, i32) {
    %c0_i32 = arith.constant 0 : i32
    %c0_i32_0 = arith.constant 0 : i32
    %c0_i32_1 = arith.constant 0 : i32
    return %c0_i32, %c0_i32_0 : i32, i32
  }
  func.func @transform_2(%arg0: i32) -> (i32, i32) {
    %c0_i32 = arith.constant 0 : i32
    %c0_i32_0 = arith.constant 0 : i32
    return %arg0, %c0_i32 : i32, i32
  }
}

</mosaic_0001>

<llo_original>
// kernel: tpu_custom_call.1
$region0: #{tpu_custom_call.1}
  #allocation0 [shape = 'u32[]', space=smem, size = 0x4, offset = 0x4, fixed_abs, tag = 'smem constant byte address 0x4 - core index']
  #allocation1 [shape = 'u32[72,128]{1,0:T(1,128)}', space=vmem, size = 0x9000, scoped, tag = 'internal scratch']
  %s0 = inlined_call_operand.hbm [shape: f32[2,32], index: 0, kind: input, shape index: {}]
  %s1 = inlined_call_operand.hbm [shape: f32[1,256], index: 1, kind: input, shape index: {}]
  %s2 = inlined_call_operand.hbm [shape: f32[2,256], index: 2, kind: output, shape index: {}]
  %s3 = sld [smem:[#allocation0]]
  $region26: #{tpu_custom_call.1} parent=0
    _
  %s5 = ssub.s32 1, %s3
  %s6 = scalar_select 0, %s5, %s3
  $region1: #{tpu_custom_call.1} parent=0
    #allocation2 [shape = 'u8[1024]{0}', space=vmem, size = 0x400, scoped, tag = 'input window, operand 0, single buffered']
    #allocation3 [shape = 's32[1]{0}', space=sflag, size = 0x4, scoped, tag = 'scoped memory for tpu_custom_call.1']
    #allocation4 [shape = 's32[1]{0}', space=sflag, size = 0x4, scoped, tag = 'scoped memory for tpu_custom_call.1']
    #allocation5 [shape = 'u8[1024]{0}', space=vmem, size = 0x400, scoped, tag = 'input window, operand 1, single buffered']
    #allocation6 [shape = 's32[1]{0}', space=sflag, size = 0x4, scoped, tag = 'scoped memory for tpu_custom_call.1']
    #allocation7 [shape = 'u8[2048]{0}', space=vmem, size = 0x800, scoped, tag = 'output window, operand 0, single buffered']
    %7 = vsyncpa [#allocation3], 0
    %8 = vsyncpa [#allocation6], 0
    %9 = vsyncpa [#allocation4], 0
    // Predicated region
    $region2: #{tpu_custom_call.1} parent=1 // pred_check
      _
    $region3: #{tpu_custom_call.1} parent=1 // pred_check_branch
      %11 = sbr.rel (0) target = $region5
    $region4: #{tpu_custom_call.1} parent=1 // pred_region
      %13 = vsyncadd [#allocation3], 0
      %s15 = sshll.u32 %s0, 4
      %s16 = int_to_ptr.hbm [resolvable:$true] %s15
      %s17 = sshll.u32 [#allocation2], 4
      %s18 = int_to_ptr.vmem [resolvable:$true] %s17
      %20 = dma.hbm_to_vmem [thread:$0]  %s16, 32, %s18, [#allocation3]
    $region5: #{tpu_custom_call.1} parent=1 // pred_fallthru
      _
    // Predicated region
    $region6: #{tpu_custom_call.1} parent=1 // pred_check
      _
    $region7: #{tpu_custom_call.1} parent=1 // pred_check_branch
      %22 = sbr.rel (0) target = $region9
    $region8: #{tpu_custom_call.1} parent=1 // pred_region
      %24 = vsyncadd [#allocation6], 0
      %s26 = sshll.u32 %s1, 4
      %s27 = int_to_ptr.hbm [resolvable:$true] %s26
      %s28 = sshll.u32 [#allocation5], 4
      %s29 = int_to_ptr.vmem [resolvable:$true] %s28
      %31 = dma.hbm_to_vmem [thread:$0]  %s27, 32, %s29, [#allocation6]
    $region9: #{tpu_custom_call.1} parent=1 // pred_fallthru
      _
    // Predicated region
    $region10: #{tpu_custom_call.1} parent=1 // pred_check
      _
    $region11: #{tpu_custom_call.1} parent=1 // pred_check_branch
      %33 = sbr.rel (0) target = $region13
    $region12: #{tpu_custom_call.1} parent=1 // pred_region
      %35 = dma.done [#allocation3], 32
    $region13: #{tpu_custom_call.1} parent=1 // pred_fallthru
      _
    // Predicated region
    $region14: #{tpu_custom_call.1} parent=1 // pred_check
      _
    $region15: #{tpu_custom_call.1} parent=1 // pred_check_branch
      %37 = sbr.rel (0) target = $region17
    $region16: #{tpu_custom_call.1} parent=1 // pred_region
      %39 = dma.done [#allocation6], 32
    $region17: #{tpu_custom_call.1} parent=1 // pred_fallthru
      _
    %v40 = vld [vmem:[#allocation2] sm:$0x3]
    %42 = vrot.lane.b32.xlu0 %v40, 32
    %v43 = vpop.permute.xlu0 %42
    %45 = vrot.lane.b32.xlu0 %v40, 64
    %v46 = vpop.permute.xlu0 %45
    %48 = vrot.lane.b32.xlu0 %v40, 96
    %v49 = vpop.permute.xlu0 %48
    %vm51 = vcmask 261120
    %v52 = vsel %vm51, %v40, %v43
    %vm53 = vcmask 523264
    %v54 = vsel %vm53, %v52, %v46
    %vm55 = vcmask 785408
    %v56 = vsel %vm55, %v54, %v49
    %v57 = vld [vmem:[#allocation5] sm:$0x3]
    %v59 = vperm.slane %v57, 0
    %v60 = vperm.slane %v57, 1
    %v63 = vadd.f32 %v56, %v59
    %v64 = vadd.f32 %v56, %v60
    %v67 = vrot.slane %v64, 6
    %vm68 = vcmask 1041408
    %v69 = vsel %vm68, %v63, %v67
    %71 = vst [vmem:[#allocation7] sm:$0xf] %v69
    // Predicated region
    $region18: #{tpu_custom_call.1} parent=1 // pred_check
      _
    $region19: #{tpu_custom_call.1} parent=1 // pred_check_branch
      %73 = sbr.rel (0) target = $region21
    $region20: #{tpu_custom_call.1} parent=1 // pred_region
      %75 = vsyncadd [#allocation4], 0
      %s77 = sshll.u32 [#allocation7], 4
      %s78 = int_to_ptr.vmem [resolvable:$true] %s77
      %s79 = sshll.u32 %s2, 4
      %s80 = int_to_ptr.hbm [resolvable:$true] %s79
      %82 = dma.vmem_to_hbm [thread:$0]  %s78, 64, %s80, [#allocation4]
    $region21: #{tpu_custom_call.1} parent=1 // pred_fallthru
      _
    // Predicated region
    $region22: #{tpu_custom_call.1} parent=1 // pred_check
      _
    $region23: #{tpu_custom_call.1} parent=1 // pred_check_branch
      %84 = sbr.rel (0) target = $region25
    $region24: #{tpu_custom_call.1} parent=1 // pred_region
      %86 = dma.done [#allocation4], 64
    $region25: #{tpu_custom_call.1} parent=1 // pred_fallthru
      _
    %87 = vsyncpa [#allocation3], 1
    %88 = vsyncpa [#allocation6], 1
    %89 = vsyncpa [#allocation4], 1

</llo_original>
